<compile_context>
chip_gen: v7x
topology: tpu7x:2x2x1
jax: 0.10.0
libtpu: 0.0.40
codegen_flags: <defaults>
</compile_context>

<pallas_src>
import functools

import jax
import jax.numpy as jnp
from jax.experimental import pallas as pl
from jax.experimental.pallas import tpu as pltpu


# ----------------------------------------------------------------------------- tiling

def _fit_tile(dim, target, align):
    """Largest tile <= target that divides `dim` and is `align`-aligned, else full dim."""
    if dim <= target:
        return dim
    t = (target // align) * align
    while t >= align:
        if dim % t == 0:
            return t
        t -= align
    return dim


# ----------------------------------------------------------------------------- kernels

def _matmul_kernel(*refs, act, has_res, has_ln, ln_eps):
    """Tiled x@w + b with optional activation / residual-add / LayerNorm epilogue."""
    idx = 0
    x_ref = refs[idx]; idx += 1
    w_ref = refs[idx]; idx += 1
    b_ref = refs[idx]; idx += 1
    res_ref = None
    if has_res:
        res_ref = refs[idx]; idx += 1
    if has_ln:
        g_ref = refs[idx]; beta_ref = refs[idx + 1]; idx += 2
    o_ref = refs[idx]; idx += 1
    acc_ref = refs[idx]

    k = pl.program_id(2)

    @pl.when(k == 0)
    def _():
        acc_ref[...] = jnp.zeros_like(acc_ref)

    acc_ref[...] += jnp.dot(x_ref[...], w_ref[...],
                            preferred_element_type=jnp.float32)

    @pl.when(k == pl.num_programs(2) - 1)
    def _():
        y = acc_ref[...] + b_ref[...].astype(jnp.float32)
        if act == "relu":
            y = jnp.maximum(y, 0.0)
        elif act == "tanh":
            y = jnp.tanh(y)
        elif act == "sigmoid":
            y = jax.nn.sigmoid(y)
        if has_res:
            y = y + res_ref[...].astype(jnp.float32)
        if has_ln:
            mu = jnp.mean(y, axis=-1, keepdims=True)
            var = jnp.mean((y - mu) ** 2, axis=-1, keepdims=True)
            y = (y - mu) * jax.lax.rsqrt(var + ln_eps)
            y = y * g_ref[...].astype(jnp.float32) + beta_ref[...].astype(jnp.float32)
        o_ref[...] = y.astype(o_ref.dtype)


def pallas_linear(x, w, b, *, act="none", residual=None, ln=None,
                  out_dtype=jnp.bfloat16, tm=256, tn=512, tk=512):
    """Fused tiled (x @ w + b) [+act] [+residual] [+LayerNorm].  x:[M,K] w:[K,N] b:[N]."""
    M, K = x.shape
    K2, N = w.shape
    assert K == K2
    has_res = residual is not None
    has_ln = ln is not None
    if has_ln:
        tn = N                      # LayerNorm needs the full feature row per tile
    tm = _fit_tile(M, tm, 8)
    tn = _fit_tile(N, tn, 128)
    tk = _fit_tile(K, tk, 128)
    grid = (M // tm, N // tn, K // tk)

    in_specs = [
        pl.BlockSpec((tm, tk), lambda i, j, k: (i, k)),
        pl.BlockSpec((tk, tn), lambda i, j, k: (k, j)),
        pl.BlockSpec((1, tn), lambda i, j, k: (0, j)),
    ]
    args = [x.astype(jnp.bfloat16), w.astype(jnp.bfloat16),
            b.reshape(1, N).astype(jnp.float32)]
    if has_res:
        in_specs.append(pl.BlockSpec((tm, tn), lambda i, j, k: (i, j)))
        args.append(residual.astype(jnp.bfloat16))
    if has_ln:
        gamma, beta = ln
        in_specs.append(pl.BlockSpec((1, tn), lambda i, j, k: (0, j)))
        in_specs.append(pl.BlockSpec((1, tn), lambda i, j, k: (0, j)))
        args.append(gamma.reshape(1, N).astype(jnp.float32))
        args.append(beta.reshape(1, N).astype(jnp.float32))

    return pl.pallas_call(
        functools.partial(_matmul_kernel, act=act, has_res=has_res,
                          has_ln=has_ln, ln_eps=1e-5),
        out_shape=jax.ShapeDtypeStruct((M, N), out_dtype),
        grid=grid,
        in_specs=in_specs,
        out_specs=pl.BlockSpec((tm, tn), lambda i, j, k: (i, j)),
        scratch_shapes=[pltpu.VMEM((tm, tn), jnp.float32)],
        compiler_params=pltpu.CompilerParams(
            dimension_semantics=("parallel", "parallel", "arbitrary")),
    )(*args)


def _cost_proj_kernel(f1_ref, f2_ref, wc_ref, bc_ref, o_ref, acc_ref, *, scale):
    """Fused cost-volume + cost-token projection: relu((f1 f2^T * scale) @ Wc + bc)."""
    k = pl.program_id(2)

    @pl.when(k == 0)
    def _():
        acc_ref[...] = jnp.zeros_like(acc_ref)

    f1 = f1_ref[0]
    f2 = f2_ref[0]
    # contract the feature dim directly (no materialized transpose of f2)
    s = jax.lax.dot_general(f1, f2, (((1,), (1,)), ((), ())),
                            preferred_element_type=jnp.float32) * scale
    acc_ref[...] += jnp.dot(s.astype(jnp.bfloat16), wc_ref[...],
                            preferred_element_type=jnp.float32)

    @pl.when(k == pl.num_programs(2) - 1)
    def _():
        y = jnp.maximum(acc_ref[...] + bc_ref[...].astype(jnp.float32), 0.0)
        o_ref[0] = y.astype(o_ref.dtype)


def pallas_cost_proj(f1, f2, w_cproj, b_cproj, scale, *, tm=256, tk=512,
                     out_dtype=jnp.bfloat16):
    """f1:[B,N1,D] f2:[B,N2,D] w:[N2,Dm] -> [B,N1,Dm]; the [B,N1,N2] cost never hits HBM."""
    B, N1, D = f1.shape
    _, N2, _ = f2.shape
    Dm = w_cproj.shape[1]
    tm = _fit_tile(N1, tm, 8)
    tk = _fit_tile(N2, tk, 8)
    grid = (B, N1 // tm, N2 // tk)
    return pl.pallas_call(
        functools.partial(_cost_proj_kernel, scale=scale),
        out_shape=jax.ShapeDtypeStruct((B, N1, Dm), out_dtype),
        grid=grid,
        in_specs=[
            pl.BlockSpec((1, tm, D), lambda b, i, j: (b, i, 0)),
            pl.BlockSpec((1, tk, D), lambda b, i, j: (b, j, 0)),
            pl.BlockSpec((tk, Dm), lambda b, i, j: (j, 0)),
            pl.BlockSpec((1, Dm), lambda b, i, j: (0, 0)),
        ],
        out_specs=pl.BlockSpec((1, tm, Dm), lambda b, i, j: (b, i, 0)),
        scratch_shapes=[pltpu.VMEM((tm, Dm), jnp.float32)],
        compiler_params=pltpu.CompilerParams(
            dimension_semantics=("parallel", "parallel", "arbitrary")),
    )(f1.astype(jnp.bfloat16), f2.astype(jnp.bfloat16),
      w_cproj.astype(jnp.bfloat16), b_cproj.reshape(1, Dm).astype(jnp.float32))


def _flash_kernel(q_ref, k_ref, v_ref, o_ref, m_sc, l_sc, acc_sc, *, scale):
    kk = pl.program_id(2)

    @pl.when(kk == 0)
    def _():
        m_sc[...] = jnp.full_like(m_sc, -jnp.inf)
        l_sc[...] = jnp.zeros_like(l_sc)
        acc_sc[...] = jnp.zeros_like(acc_sc)

    q = q_ref[0]
    k = k_ref[0]
    v = v_ref[0]
    s = jax.lax.dot_general(q, k, (((1,), (1,)), ((), ())),
                            preferred_element_type=jnp.float32) * scale
    m_prev = m_sc[...]
    m_new = jnp.maximum(m_prev, jnp.max(s, axis=-1, keepdims=True))
    alpha = jnp.exp(m_prev - m_new)
    p = jnp.exp(s - m_new)
    l_sc[...] = alpha * l_sc[...] + jnp.sum(p, axis=-1, keepdims=True)
    acc_sc[...] = alpha * acc_sc[...] + jnp.dot(p.astype(v.dtype), v,
                                                preferred_element_type=jnp.float32)
    m_sc[...] = m_new

    @pl.when(kk == pl.num_programs(2) - 1)
    def _():
        o_ref[0] = (acc_sc[...] *
                    pl.reciprocal(l_sc[...], approx=True)).astype(o_ref.dtype)


def pallas_attention(q, k, v, scale, *, tq=256, tkv=512, out_dtype=jnp.bfloat16):
    """Flash-style softmax(q k^T * scale) v, tiled over the key axis."""
    B, Nq, D = q.shape
    _, Nk, _ = k.shape
    tq = _fit_tile(Nq, tq, 8)
    tkv = _fit_tile(Nk, tkv, 8)
    grid = (B, Nq // tq, Nk // tkv)
    return pl.pallas_call(
        functools.partial(_flash_kernel, scale=scale),
        out_shape=jax.ShapeDtypeStruct((B, Nq, D), out_dtype),
        grid=grid,
        in_specs=[
            pl.BlockSpec((1, tq, D), lambda b, i, j: (b, i, 0)),
            pl.BlockSpec((1, tkv, D), lambda b, i, j: (b, j, 0)),
            pl.BlockSpec((1, tkv, D), lambda b, i, j: (b, j, 0)),
        ],
        out_specs=pl.BlockSpec((1, tq, D), lambda b, i, j: (b, i, 0)),
        scratch_shapes=[
            pltpu.VMEM((tq, 1), jnp.float32),
            pltpu.VMEM((tq, 1), jnp.float32),
            pltpu.VMEM((tq, D), jnp.float32),
        ],
        compiler_params=pltpu.CompilerParams(
            dimension_semantics=("parallel", "parallel", "arbitrary")),
    )(q.astype(jnp.bfloat16), k.astype(jnp.bfloat16), v.astype(jnp.bfloat16))


def _decoder_kernel(net_ref, inp_ref, kmem_ref, vmem_ref,
                    wmf_ref, bmf_ref, wq_ref, bq_ref,
                    wh_ref, bh_ref, wdf_ref, bdf_ref,
                    flows_ref, *, iters, scale, d_net, d_mem):
    """All DEC_ITERS refinement iterations, fully VMEM-resident per token tile."""
    net = net_ref[0]                          # [tm, d_net] bf16
    inp = inp_ref[0]                          # [tm, d_net] bf16
    k_mem = kmem_ref[0]                       # [N1, d_mem] bf16
    v_mem = vmem_ref[0]                       # [N1, d_mem] bf16

    w_mf = wmf_ref[...]                       # [2, d_mem]
    b_mf = bmf_ref[...].astype(jnp.float32)
    w_q = wq_ref[...]                         # [d_net + d_mem, d_mem]
    b_q = bq_ref[...].astype(jnp.float32)
    w_h = wh_ref[...]                         # [d_mem + d_net + d_mem, 128]
    b_h = bh_ref[...].astype(jnp.float32)
    w_df = wdf_ref[...]                       # [128, 2]
    b_df = bdf_ref[...].astype(jnp.float32)

    # static splits of the concat weights (avoids in-kernel concatenation)
    w_q_net, w_q_mf = w_q[:d_net], w_q[d_net:]
    w_h_cf = w_h[:d_mem]
    w_h_inp = w_h[d_mem:d_mem + d_net]
    w_h_mf = w_h[d_mem + d_net:]

    tm = net.shape[0]
    flow = jnp.zeros((tm, 2), jnp.float32)

    # loop-invariant contributions
    q_net = jnp.dot(net, w_q_net, preferred_element_type=jnp.float32)
    h_inp = jnp.dot(inp, w_h_inp, preferred_element_type=jnp.float32)

    for it in range(iters):                   # static, small trip count
        mf = jnp.maximum(
            jnp.dot(flow.astype(jnp.bfloat16), w_mf,
                    preferred_element_type=jnp.float32) + b_mf, 0.0)
        mf_b = mf.astype(jnp.bfloat16)
        q_dec = (q_net + jnp.dot(mf_b, w_q_mf, preferred_element_type=jnp.float32)
                 + b_q).astype(jnp.bfloat16)
        # cross-attention into cost memory (all keys resident in VMEM)
        s = jax.lax.dot_general(q_dec, k_mem, (((1,), (1,)), ((), ())),
                                preferred_element_type=jnp.float32) * scale
        s = s - jnp.max(s, axis=-1, keepdims=True)
        p = jnp.exp(s)
        p = p * pl.reciprocal(jnp.sum(p, axis=-1, keepdims=True), approx=True)
        cost_feat = jnp.dot(p.astype(jnp.bfloat16), v_mem,
                            preferred_element_type=jnp.float32)
        hidden = jnp.tanh(
            jnp.dot(cost_feat.astype(jnp.bfloat16), w_h_cf,
                    preferred_element_type=jnp.float32)
            + h_inp
            + jnp.dot(mf_b, w_h_mf, preferred_element_type=jnp.float32)
            + b_h)
        dflow = jnp.dot(hidden.astype(jnp.bfloat16), w_df,
                        preferred_element_type=jnp.float32) + b_df
        flow = flow + dflow
        flows_ref[0, it] = flow.astype(flows_ref.dtype)


def pallas_decoder(net, inp, k_mem, v_mem, params, *, iters, tm=128):
    B, N1, Dn = net.shape
    Dm = k_mem.shape[-1]
    tm = _fit_tile(N1, tm, 8)
    grid = (B, N1 // tm)
    kern = functools.partial(_decoder_kernel, iters=iters,
                             scale=1.0 / (Dm ** 0.5), d_net=Dn, d_mem=Dm)
    return pl.pallas_call(
        kern,
        out_shape=jax.ShapeDtypeStruct((B, iters, N1, 2), jnp.float32),
        grid=grid,
        in_specs=[
            pl.BlockSpec((1, tm, Dn), lambda b, i: (b, i, 0)),
            pl.BlockSpec((1, tm, Dn), lambda b, i: (b, i, 0)),
            pl.BlockSpec((1, N1, Dm), lambda b, i: (b, 0, 0)),
            pl.BlockSpec((1, N1, Dm), lambda b, i: (b, 0, 0)),
            pl.BlockSpec((2, Dm), lambda b, i: (0, 0)),
            pl.BlockSpec((1, Dm), lambda b, i: (0, 0)),
            pl.BlockSpec((Dn + Dm, Dm), lambda b, i: (0, 0)),
            pl.BlockSpec((1, Dm), lambda b, i: (0, 0)),
            pl.BlockSpec((Dm + Dn + Dm, 128), lambda b, i: (0, 0)),
            pl.BlockSpec((1, 128), lambda b, i: (0, 0)),
            pl.BlockSpec((128, 2), lambda b, i: (0, 0)),
            pl.BlockSpec((1, 2), lambda b, i: (0, 0)),
        ],
        out_specs=pl.BlockSpec((1, iters, tm, 2), lambda b, i: (b, 0, i, 0)),
        compiler_params=pltpu.CompilerParams(
            dimension_semantics=("parallel", "parallel")),
    )(net.astype(jnp.bfloat16), inp.astype(jnp.bfloat16),
      k_mem.astype(jnp.bfloat16), v_mem.astype(jnp.bfloat16),
      params["W_mf"].astype(jnp.bfloat16),
      params["b_mf"].reshape(1, Dm).astype(jnp.float32),
      params["W_qdec"].astype(jnp.bfloat16),
      params["b_qdec"].reshape(1, Dm).astype(jnp.float32),
      params["W_h"].astype(jnp.bfloat16),
      params["b_h"].reshape(1, 128).astype(jnp.float32),
      params["W_df"].astype(jnp.bfloat16),
      params["b_df"].reshape(1, 2).astype(jnp.float32))


# ----------------------------------------------------------------------------- glue

class InputPadder:
    """Pads NCHW images so that H, W are divisible by 8 (FlowFormer 'chairs' mode)."""

    def __init__(self, dims, mode="chairs"):
        self.ht, self.wd = dims[-2:]
        pad_ht = (((self.ht // 8) + 1) * 8 - self.ht) % 8
        pad_wd = (((self.wd // 8) + 1) * 8 - self.wd) % 8
        if mode == "sintel":
            self._pad = [pad_wd // 2, pad_wd - pad_wd // 2, pad_ht // 2, pad_ht - pad_ht // 2]
        else:
            self._pad = [pad_wd // 2, pad_wd - pad_wd // 2, 0, pad_ht]

    def padded_hw(self):
        return (self.ht + self._pad[2] + self._pad[3],
                self.wd + self._pad[0] + self._pad[1])

    def pad(self, *inputs):
        pw = ((0, 0), (0, 0), (self._pad[2], self._pad[3]), (self._pad[0], self._pad[1]))
        return [jnp.pad(x, pw, mode="edge") for x in inputs]

    def unpad(self, x):
        ht, wd = x.shape[-2:]
        c = [self._pad[2], ht - self._pad[3], self._pad[0], wd - self._pad[1]]
        return x[..., c[0]:c[1], c[2]:c[3]]


def patchify(x_nchw, patch):
    """[B, C, H, W] -> [B, (H/p)*(W/p), p*p*C] token layout."""
    B, C, H, W = x_nchw.shape
    hp, wp = H // patch, W // patch
    x = jnp.transpose(x_nchw, (0, 2, 3, 1))                       # NHWC
    x = x.reshape(B, hp, patch, wp, patch, C)
    x = jnp.transpose(x, (0, 1, 3, 2, 4, 5))
    return x.reshape(B, hp * wp, patch * patch * C)


# ----------------------------------------------------------------------------- model

PATCH = 8
D_CTX = 256
D_FEAT = 64
D_MEM = 64
DEC_ITERS = 3


class Cfg:
    context_concat = False


def init_params(key, in_ch, img_hw):
    """All weights created once; W_cproj is derived from the padded resolution."""
    H, W = img_hw
    padder = InputPadder((H, W), mode="chairs")
    Hp, Wp = padder.padded_hw()
    N2 = (Hp // PATCH) * (Wp // PATCH)
    pdim = PATCH * PATCH * in_ch

    def w(k, shape):
        return 0.05 * jax.random.normal(k, shape, dtype=jnp.float32)

    ks = iter(jax.random.split(key, 16))
    # TODO(synk): the dense [N2, D_MEM] cost-token projection is a resolution-dependent
    #             stand-in for FlowFormer's patchified cost-memory encoder.
    p = {
        "W_ctx": w(next(ks), (pdim, D_CTX)), "b_ctx": jnp.zeros((D_CTX,), jnp.float32),
        "W_feat": w(next(ks), (pdim, D_FEAT)), "b_feat": jnp.zeros((D_FEAT,), jnp.float32),
        "W_cproj": w(next(ks), (N2, D_MEM)), "b_cproj": jnp.zeros((D_MEM,), jnp.float32),
        # fused QKV projection (lane-dense 192-wide output)
        "W_qkv": w(next(ks), (D_MEM, 3 * D_MEM)), "b_qkv": jnp.zeros((3 * D_MEM,), jnp.float32),
        "Wo": w(next(ks), (D_MEM, D_MEM)), "bo": jnp.zeros((D_MEM,), jnp.float32),
        "ln1_g": jnp.ones((D_MEM,), jnp.float32), "ln1_b": jnp.zeros((D_MEM,), jnp.float32),
        "W_ff1": w(next(ks), (D_MEM, 2 * D_MEM)), "b_ff1": jnp.zeros((2 * D_MEM,), jnp.float32),
        "W_ff2": w(next(ks), (2 * D_MEM, D_MEM)), "b_ff2": jnp.zeros((D_MEM,), jnp.float32),
        "ln2_g": jnp.ones((D_MEM,), jnp.float32), "ln2_b": jnp.zeros((D_MEM,), jnp.float32),
        # fused decoder K/V projection (lane-dense 128-wide output)
        "W_kv_dec": w(next(ks), (D_MEM, 2 * D_MEM)), "b_kv_dec": jnp.zeros((2 * D_MEM,), jnp.float32),
        "W_mf": w(next(ks), (2, D_MEM)), "b_mf": jnp.zeros((D_MEM,), jnp.float32),
        "W_qdec": w(next(ks), (128 + D_MEM, D_MEM)), "b_qdec": jnp.zeros((D_MEM,), jnp.float32),
        "W_h": w(next(ks), (D_MEM + 128 + D_MEM, 128)), "b_h": jnp.zeros((128,), jnp.float32),
        "W_df": w(next(ks), (128, 2)), "b_df": jnp.zeros((2,), jnp.float32),
    }
    return p


def flowformer_forward(params, cfg, events1, events2):
    B, C, H, W = events1.shape
    padder = InputPadder((H, W), mode="chairs")
    image1, image2 = padder.pad(events1, events2)
    Hp, Wp = image1.shape[-2:]
    h8, w8 = Hp // PATCH, Wp // PATCH
    N1 = h8 * w8

    # ---- context encoder (BasicEncoder stand-in) ----
    ctx_in = jnp.concatenate([image1, image2], axis=1) if cfg.context_concat else image1
    tok_ctx = patchify(ctx_in, PATCH).reshape(B * N1, -1)
    # 256-wide head split into two lane-dense 128-wide heads with fused activations
    net = pallas_linear(tok_ctx, params["W_ctx"][:, :128], params["b_ctx"][:128],
                        act="tanh").reshape(B, N1, 128)
    inp = pallas_linear(tok_ctx, params["W_ctx"][:, 128:], params["b_ctx"][128:],
                        act="relu").reshape(B, N1, 128)

    # ---- memory encoder ----
    tok12 = jnp.concatenate([patchify(image1, PATCH), patchify(image2, PATCH)],
                            axis=0).reshape(2 * B * N1, -1)
    f12 = pallas_linear(tok12, params["W_feat"], params["b_feat"], act="relu")
    f12 = f12.reshape(2, B, N1, D_FEAT)
    f1, f2 = f12[0], f12[1]

    # fused all-pairs cost volume + cost-token projection (cost tensor stays in VMEM)
    mem0 = pallas_cost_proj(f1, f2, params["W_cproj"], params["b_cproj"],
                            scale=1.0 / (D_FEAT ** 0.5))          # [B, N1, D_MEM]

    # one transformer (self-attention) layer over cost tokens
    flat = mem0.reshape(B * N1, D_MEM)
    qkv = pallas_linear(flat, params["W_qkv"], params["b_qkv"]).reshape(B, N1, 3 * D_MEM)
    q, k, v = qkv[..., :D_MEM], qkv[..., D_MEM:2 * D_MEM], qkv[..., 2 * D_MEM:]
    attn = pallas_attention(q, k, v, scale=1.0 / (D_MEM ** 0.5))
    # Wo projection with residual-add + LayerNorm fused in the epilogue
    mem = pallas_linear(attn.reshape(B * N1, D_MEM), params["Wo"], params["bo"],
                        residual=flat, ln=(params["ln1_g"], params["ln1_b"]))
    ff = pallas_linear(mem, params["W_ff1"], params["b_ff1"], act="relu")
    cost_memory = pallas_linear(ff, params["W_ff2"], params["b_ff2"],
                                residual=mem, ln=(params["ln2_g"], params["ln2_b"]))

    # ---- memory decoder (iterative flow refinement, fully fused) ----
    kv_mem = pallas_linear(cost_memory, params["W_kv_dec"],
                           params["b_kv_dec"]).reshape(B, N1, 2 * D_MEM)
    k_mem, v_mem = kv_mem[..., :D_MEM], kv_mem[..., D_MEM:]

    flows = pallas_decoder(net, inp, k_mem, v_mem, params, iters=DEC_ITERS)
    # flows: [B, DEC_ITERS, N1, 2] f32

    flow_predictions = []
    for it in range(DEC_ITERS):
        fmap = flows[:, it].reshape(B, h8, w8, 2)
        fmap = jnp.transpose(fmap, (0, 3, 1, 2))                   # [B, 2, h8, w8]
        # TODO(synk): convex-upsampling mask replaced by nearest x8 upsample.
        fup = 8.0 * jnp.repeat(jnp.repeat(fmap, PATCH, axis=2), PATCH, axis=3)
        flow_predictions.append(padder.unpad(fup))
    return (events1, events2), flow_predictions


# ----------------------------------------------------------------------------- main

if __name__ == "__main__":
    key = jax.random.PRNGKey(0)
    k1, k2, kp = jax.random.split(key, 3)

    B, C, H, W = 2, 4, 16, 16
    events1 = jax.random.normal(k1, (B, C, H, W), dtype=jnp.float32)
    events2 = jax.random.normal(k2, (B, C, H, W), dtype=jnp.float32)

    cfg = Cfg()
    params = init_params(kp, in_ch=(2 * C if cfg.context_concat else C), img_hw=(H, W))

    (e1, e2), flow_preds = flowformer_forward(params, cfg, events1, events2)
    for fp in flow_preds:
        jax.block_until_ready(fp)
        assert fp.shape == (B, 2, H, W), fp.shape
        assert bool(jnp.all(jnp.isfinite(fp)))
    print("KERNEL_OK")
</pallas_src>

<mosaic_0001>
module attributes {stable_mosaic.version = 11 : i64} {
  func.func @_matmul_kernel(%arg0: i32, %arg1: i32, %arg2: i32, %arg3: memref<8x256xbf16, #tpu.memory_space<vmem>>, %arg4: memref<256x128xbf16, #tpu.memory_space<vmem>>, %arg5: memref<1x128xf32, #tpu.memory_space<vmem>>, %arg6: memref<8x128xbf16, #tpu.memory_space<vmem>>, %arg7: memref<8x128xf32, #tpu.memory_space<vmem>>) attributes {dimension_semantics = [#tpu.dimension_semantics<parallel>, #tpu.dimension_semantics<parallel>, #tpu.dimension_semantics<arbitrary>], iteration_bounds = array<i64: 1, 1, 1>, scalar_prefetch = 0 : i64, scratch_operands = 1 : i64, tpu.core_type = #tpu.core_type<tc>, window_params = [{transform_indices = @transform_0, window_bounds = array<i64: 8, 256>}, {transform_indices = @transform_1, window_bounds = array<i64: 256, 128>}, {transform_indices = @transform_2, window_bounds = array<i64: 1, 128>}, {transform_indices = @transform_3, window_bounds = array<i64: 8, 128>}]} {
    %c0_i32 = arith.constant 0 : i32
    %0 = arith.cmpi eq, %arg2, %c0_i32 : i32
    %1 = arith.extui %0 : i1 to i32
    %c0_i32_0 = arith.constant 0 : i32
    %2 = arith.cmpi ne, %1, %c0_i32_0 : i32
    scf.if %2 {
      %cst_10 = arith.constant 0.000000e+00 : f32
      %12 = vector.broadcast %cst_10 : f32 to vector<8x128xf32>
      %c0_11 = arith.constant 0 : index
      %c0_12 = arith.constant 0 : index
      %13 = vector.load %arg7[%c0_11, %c0_12] : memref<8x128xf32, #tpu.memory_space<vmem>>, vector<8x128xf32>
      tpu.vector_store %arg7[%c0_11, %c0_12], %12 {strides = array<i32>} : memref<8x128xf32, #tpu.memory_space<vmem>>, vector<8x128xf32>,
    } else {
    }
    %c0 = arith.constant 0 : index
    %c0_1 = arith.constant 0 : index
    %3 = vector.load %arg7[%c0, %c0_1] : memref<8x128xf32, #tpu.memory_space<vmem>>, vector<8x128xf32>
    %c0_2 = arith.constant 0 : index
    %c0_3 = arith.constant 0 : index
    %4 = vector.load %arg3[%c0_2, %c0_3] : memref<8x256xbf16, #tpu.memory_space<vmem>>, vector<8x256xbf16>
    %c0_4 = arith.constant 0 : index
    %c0_5 = arith.constant 0 : index
    %5 = vector.load %arg4[%c0_4, %c0_5] : memref<256x128xbf16, #tpu.memory_space<vmem>>, vector<256x128xbf16>
    %cst = arith.constant dense<0.000000e+00> : vector<8x128xf32>
    %6 = tpu.matmul %4, %5, %cst {dimension_numbers = #tpu.dot_dimension_numbers<[1], [0], [0], [1], [0, 0, 1, 1], [], []>} : vector<8x256xbf16>, vector<256x128xbf16>, vector<8x128xf32> -> vector<8x128xf32>
    %7 = arith.addf %3, %6 : vector<8x128xf32>
    %c0_6 = arith.constant 0 : index
    %c0_7 = arith.constant 0 : index
    %8 = vector.load %arg7[%c0_6, %c0_7] : memref<8x128xf32, #tpu.memory_space<vmem>>, vector<8x128xf32>
    tpu.vector_store %arg7[%c0_6, %c0_7], %7 {strides = array<i32>} : memref<8x128xf32, #tpu.memory_space<vmem>>, vector<8x128xf32>,
    %c0_i32_8 = arith.constant 0 : i32
    %9 = arith.cmpi eq, %arg2, %c0_i32_8 : i32
    %10 = arith.extui %9 : i1 to i32
    %c0_i32_9 = arith.constant 0 : i32
    %11 = arith.cmpi ne, %10, %c0_i32_9 : i32
    scf.if %11 {
      %c0_10 = arith.constant 0 : index
      %c0_11 = arith.constant 0 : index
      %12 = vector.load %arg7[%c0_10, %c0_11] : memref<8x128xf32, #tpu.memory_space<vmem>>, vector<8x128xf32>
      %c0_12 = arith.constant 0 : index
      %c0_13 = arith.constant 0 : index
      %13 = vector.load %arg5[%c0_12, %c0_13] : memref<1x128xf32, #tpu.memory_space<vmem>>, vector<1x128xf32>
      %14 = vector.broadcast %13 : vector<1x128xf32> to vector<8x128xf32>
      %15 = arith.addf %12, %14 : vector<8x128xf32>
      %16 = math.tanh %15 : vector<8x128xf32>
      %17 = arith.truncf %16 : vector<8x128xf32> to vector<8x128xbf16>
      %c0_14 = arith.constant 0 : index
      %c0_15 = arith.constant 0 : index
      %18 = vector.load %arg6[%c0_14, %c0_15] : memref<8x128xbf16, #tpu.memory_space<vmem>>, vector<8x128xbf16>
      tpu.vector_store %arg6[%c0_14, %c0_15], %17 {strides = array<i32>} : memref<8x128xbf16, #tpu.memory_space<vmem>>, vector<8x128xbf16>,
    } else {
    }
    return
  }
  func.func @transform_0(%arg0: i32, %arg1: i32, %arg2: i32) -> (i32, i32) {
    %c0_i32 = arith.constant 0 : i32
    return %arg0, %arg2 : i32, i32
  }
  func.func @transform_1(%arg0: i32, %arg1: i32, %arg2: i32) -> (i32, i32) {
    %c0_i32 = arith.constant 0 : i32
    return %arg2, %arg1 : i32, i32
  }
  func.func @transform_2(%arg0: i32, %arg1: i32, %arg2: i32) -> (i32, i32) {
    %c0_i32 = arith.constant 0 : i32
    %c0_i32_0 = arith.constant 0 : i32
    return %c0_i32, %arg1 : i32, i32
  }
  func.func @transform_3(%arg0: i32, %arg1: i32, %arg2: i32) -> (i32, i32) {
    %c0_i32 = arith.constant 0 : i32
    return %arg0, %arg1 : i32, i32
  }
}

</mosaic_0001>

<llo_original>
// kernel: tpu_custom_call.1
$region0: #{tpu_custom_call.1}
  #allocation0 [shape = 'u32[]', space=smem, size = 0x4, offset = 0x4, fixed_abs, tag = 'smem constant byte address 0x4 - core index']
  #allocation1 [shape = 'u32[144,128]{1,0:T(1,128)}', space=vmem, size = 0x12000, scoped, tag = 'internal scratch']
  #allocation2 [shape = 'f32[8,128]{1,0:T(8,128)}', space=vmem, size = 0x1000, scoped, tag = 'scratch operand']
  %s0 = inlined_call_operand.hbm [shape: bf16[8,256], index: 0, kind: input, shape index: {}]
  %s1 = inlined_call_operand.hbm [shape: bf16[256,128], index: 1, kind: input, shape index: {}]
  %s2 = inlined_call_operand.vmem [shape: f32[1,128], index: 2, kind: input, shape index: {}]
  %s3 = inlined_call_operand.hbm [shape: bf16[8,128], index: 3, kind: output, shape index: {}]
  %s4 = sld [smem:[#allocation0]]
  $region38: #{tpu_custom_call.1} parent=0
    _
  %s6 = ssub.s32 1, %s4
  %s7 = scalar_select 0, %s6, %s4
  $region1: #{tpu_custom_call.1} parent=0
    #allocation3 [shape = 'u8[4096]{0}', space=vmem, size = 0x1000, scoped, tag = 'input window, operand 0, single buffered']
    #allocation4 [shape = 's32[1]{0}', space=sflag, size = 0x4, scoped, tag = 'scoped memory for tpu_custom_call.1']
    #allocation5 [shape = 's32[1]{0}', space=sflag, size = 0x4, scoped, tag = 'scoped memory for tpu_custom_call.1']
    #allocation6 [shape = 'u8[65536]{0}', space=vmem, size = 0x10000, scoped, tag = 'input window, operand 1, single buffered']
    #allocation7 [shape = 's32[1]{0}', space=sflag, size = 0x4, scoped, tag = 'scoped memory for tpu_custom_call.1']
    #allocation8 [shape = 'u8[2048]{0}', space=vmem, size = 0x800, scoped, tag = 'output window, operand 0, single buffered']
    %8 = vsyncpa [#allocation4], 0
    %9 = vsyncpa [#allocation7], 0
    %10 = vsyncpa [#allocation5], 0
    // Predicated region
    $region2: #{tpu_custom_call.1} parent=1 // pred_check
      _
    $region3: #{tpu_custom_call.1} parent=1 // pred_check_branch
      %12 = sbr.rel (0) target = $region5
    $region4: #{tpu_custom_call.1} parent=1 // pred_region
      %s14 = ssub.s32 128, 128
      %15 = vsyncadd [#allocation4], %s14
      %s17 = sshll.u32 [#allocation3], 4
      %s18 = int_to_ptr.vmem [resolvable:$true] %s17
      %20 = dma.hbm_to_vmem [thread:$0]  %s0, 128, %s18, [#allocation4]
    $region5: #{tpu_custom_call.1} parent=1 // pred_fallthru
      _
    // Predicated region
    $region6: #{tpu_custom_call.1} parent=1 // pred_check
      _
    $region7: #{tpu_custom_call.1} parent=1 // pred_check_branch
      %22 = sbr.rel (0) target = $region9
    $region8: #{tpu_custom_call.1} parent=1 // pred_region
      %s24 = ssub.s32 2048, 2048
      %25 = vsyncadd [#allocation7], %s24
      %s26 = sshll.u32 [#allocation6], 4
      %s27 = int_to_ptr.vmem [resolvable:$true] %s26
      %32 = dma.hbm_to_vmem [thread:$0]  %s1, 2048, %s27, [#allocation7], 64, 64, 4
    $region9: #{tpu_custom_call.1} parent=1 // pred_fallthru
      _
    // Predicated region
    $region10: #{tpu_custom_call.1} parent=1 // pred_check
      _
    $region11: #{tpu_custom_call.1} parent=1 // pred_check_branch
      %34 = sbr.rel (0) target = $region13
    $region12: #{tpu_custom_call.1} parent=1 // pred_region
      _
    $region13: #{tpu_custom_call.1} parent=1 // pred_fallthru
      _
    // Predicated region
    $region14: #{tpu_custom_call.1} parent=1 // pred_check
      _
    $region15: #{tpu_custom_call.1} parent=1 // pred_check_branch
      %36 = sbr.rel (0) target = $region17
    $region16: #{tpu_custom_call.1} parent=1 // pred_region
      %37 = dma.done [#allocation4], 128
    $region17: #{tpu_custom_call.1} parent=1 // pred_fallthru
      _
    // Predicated region
    $region18: #{tpu_custom_call.1} parent=1 // pred_check
      _
    $region19: #{tpu_custom_call.1} parent=1 // pred_check_branch
      %39 = sbr.rel (0) target = $region21
    $region20: #{tpu_custom_call.1} parent=1 // pred_region
      %40 = dma.done [#allocation7], 2048
    $region21: #{tpu_custom_call.1} parent=1 // pred_fallthru
      _
    %p42 = scmp.eq.s32.totalorder 0, 0
    // Predicated region
    $region22: #{tpu_custom_call.1} parent=1 // pred_check
      %p43 = pneg %p42
    $region23: #{tpu_custom_call.1} parent=1 // pred_check_branch
      %45 = sbr.rel (%p43) target = $region25
    $region24: #{tpu_custom_call.1} parent=1 // pred_region
      %46 = vst [vmem:[#allocation2] sm:$0xff] 0.0
    $region25: #{tpu_custom_call.1} parent=1 // pred_fallthru
      _
    %v47 = vld [vmem:[#allocation2] sm:$0xff]
    %v48 = vld [vmem:[#allocation3] sm:$0xff]
    %v49 = vld [vmem:[#allocation6] sm:$0xf]
    %v50 = vld [vmem:[#allocation6 + $0x4] sm:$0xf]
    %v51 = vld [vmem:[#allocation6 + $0x8] sm:$0xf]
    %v52 = vld [vmem:[#allocation6 + $0xc] sm:$0xf]
    %v53 = vld [vmem:[#allocation6 + $0x10] sm:$0xf]
    %v54 = vld [vmem:[#allocation6 + $0x14] sm:$0xf]
    %v55 = vld [vmem:[#allocation6 + $0x18] sm:$0xf]
    %v56 = vld [vmem:[#allocation6 + $0x1c] sm:$0xf]
    %v57 = vld [vmem:[#allocation6 + $0x20] sm:$0xf]
    %v58 = vld [vmem:[#allocation6 + $0x24] sm:$0xf]
    %v59 = vld [vmem:[#allocation6 + $0x28] sm:$0xf]
    %v60 = vld [vmem:[#allocation6 + $0x2c] sm:$0xf]
    %v61 = vld [vmem:[#allocation6 + $0x30] sm:$0xf]
    %v62 = vld [vmem:[#allocation6 + $0x34] sm:$0xf]
    %v63 = vld [vmem:[#allocation6 + $0x38] sm:$0xf]
    %v64 = vld [vmem:[#allocation6 + $0x3c] sm:$0xf]
    %v65 = vld [vmem:[#allocation6 + $0x40] sm:$0xf]
    %v66 = vld [vmem:[#allocation6 + $0x44] sm:$0xf]
    %v67 = vld [vmem:[#allocation6 + $0x48] sm:$0xf]
    %v68 = vld [vmem:[#allocation6 + $0x4c] sm:$0xf]
    %v69 = vld [vmem:[#allocation6 + $0x50] sm:$0xf]
    %v70 = vld [vmem:[#allocation6 + $0x54] sm:$0xf]
    %v71 = vld [vmem:[#allocation6 + $0x58] sm:$0xf]
    %v72 = vld [vmem:[#allocation6 + $0x5c] sm:$0xf]
    %v73 = vld [vmem:[#allocation6 + $0x60] sm:$0xf]
    %v74 = vld [vmem:[#allocation6 + $0x64] sm:$0xf]
    %v75 = vld [vmem:[#allocation6 + $0x68] sm:$0xf]
    %v76 = vld [vmem:[#allocation6 + $0x6c] sm:$0xf]
    %v77 = vld [vmem:[#allocation6 + $0x70] sm:$0xf]
    %v78 = vld [vmem:[#allocation6 + $0x74] sm:$0xf]
    %v79 = vld [vmem:[#allocation6 + $0x78] sm:$0xf]
    %v80 = vld [vmem:[#allocation6 + $0x7c] sm:$0xf]
    %v82 = vunpack.c.l.b16 %v48
    %v83 = vunpack.c.h.b16 %v48
    %v84 = vpack.c.b16 %v82, %v82
    %v85 = vpack.c.b16 %v83, %v83
    %v120 = vunpack.c.l.b16 %v49
    %v121 = vunpack.c.l.b16 %v50
    %v122 = vunpack.c.l.b16 %v51
    %v123 = vunpack.c.l.b16 %v52
    %v124 = vunpack.c.l.b16 %v53
    %v125 = vunpack.c.l.b16 %v54
    %v126 = vunpack.c.l.b16 %v55
    %v127 = vunpack.c.l.b16 %v56
    %v128 = vunpack.c.l.b16 %v57
    %v129 = vunpack.c.l.b16 %v58
    %v130 = vunpack.c.l.b16 %v59
    %v131 = vunpack.c.l.b16 %v60
    %v132 = vunpack.c.l.b16 %v61
    %v133 = vunpack.c.l.b16 %v62
    %v134 = vunpack.c.l.b16 %v63
    %v135 = vunpack.c.l.b16 %v64
    %v136 = vunpack.c.l.b16 %v65
    %v137 = vunpack.c.l.b16 %v66
    %v138 = vunpack.c.l.b16 %v67
    %v139 = vunpack.c.l.b16 %v68
    %v140 = vunpack.c.l.b16 %v69
    %v141 = vunpack.c.l.b16 %v70
    %v142 = vunpack.c.l.b16 %v71
    %v143 = vunpack.c.l.b16 %v72
    %v144 = vunpack.c.l.b16 %v73
    %v145 = vunpack.c.l.b16 %v74
    %v146 = vunpack.c.l.b16 %v75
    %v147 = vunpack.c.l.b16 %v76
    %v148 = vunpack.c.l.b16 %v77
    %v149 = vunpack.c.l.b16 %v78
    %v150 = vunpack.c.l.b16 %v79
    %v151 = vunpack.c.l.b16 %v80
    %v152 = vpack.c.b16 %v121, %v120
    %v153 = vpack.c.b16 %v123, %v122
    %v154 = vpack.c.b16 %v125, %v124
    %v155 = vpack.c.b16 %v127, %v126
    %v156 = vpack.c.b16 %v129, %v128
    %v157 = vpack.c.b16 %v131, %v130
    %v158 = vpack.c.b16 %v133, %v132
    %v159 = vpack.c.b16 %v135, %v134
    %v160 = vpack.c.b16 %v137, %v136
    %v161 = vpack.c.b16 %v139, %v138
    %v162 = vpack.c.b16 %v141, %v140
    %v163 = vpack.c.b16 %v143, %v142
    %v164 = vpack.c.b16 %v145, %v144
    %v165 = vpack.c.b16 %v147, %v146
    %v166 = vpack.c.b16 %v149, %v148
    %v167 = vpack.c.b16 %v151, %v150
    %184 = vmatprep.subr.bf16.mxu0 0
    %185 = vmatpush1.bf16.msra.mxu0 %v152
    %186 = vmatprep.subr.bf16.mxu0 0
    %187 = vmatpush1.bf16.msra.mxu0 %v153
    %188 = vmatprep.subr.bf16.mxu0 0
    %189 = vmatpush1.bf16.msra.mxu0 %v154
    %190 = vmatprep.subr.bf16.mxu0 0
    %191 = vmatpush1.bf16.msra.mxu0 %v155
    %192 = vmatprep.subr.bf16.mxu0 0
    %193 = vmatpush1.bf16.msra.mxu0 %v156
    %194 = vmatprep.subr.bf16.mxu0 0
    %195 = vmatpush1.bf16.msra.mxu0 %v157
    %196 = vmatprep.subr.bf16.mxu0 0
    %197 = vmatpush1.bf16.msra.mxu0 %v158
    %198 = vmatprep.subr.bf16.mxu0 0
    %199 = vmatpush1.bf16.msra.mxu0 %v159
    %200 = vmatprep.subr.bf16.mxu0 0
    %201 = vmatpush1.bf16.msra.mxu0 %v160
    %202 = vmatprep.subr.bf16.mxu0 0
    %203 = vmatpush1.bf16.msra.mxu0 %v161
    %204 = vmatprep.subr.bf16.mxu0 0
    %205 = vmatpush1.bf16.msra.mxu0 %v162
    %206 = vmatprep.subr.bf16.mxu0 0
    %207 = vmatpush1.bf16.msra.mxu0 %v163
    %208 = vmatprep.subr.bf16.mxu0 0
    %209 = vmatpush1.bf16.msra.mxu0 %v164
    %210 = vmatprep.subr.bf16.mxu0 0
    %211 = vmatpush1.bf16.msra.mxu0 %v165
    %212 = vmatprep.subr.bf16.mxu0 0
    %213 = vmatpush1.bf16.msra.mxu0 %v166
    %214 = vmatprep.subr.bf16.mxu0 0
    %215 = vmatpush1.bf16.msra.mxu0 %v167
    %216 = vmatprep.mubr.bf16.mxu0 %v85
    %217 = vmatmul.mubr.bf16.gmra.mrb[0].mxu0 %v84
    %v218 = vpop.f32.mrb[0].mxu0
    %v219 = vadd.f32 0.0, %v218
    %v220 = vpop.f32.mrb[0].mxu0
    %v221 = vpop.f32.mrb[0].mxu0
    %v222 = vpop.f32.mrb[0].mxu0
    %223 = vdwg.mxu0
    %v224 = vadd.f32 %v47, %v219
    %225 = vst [vmem:[#allocation2] sm:$0xff] %v224
    // Predicated region
    $region26: #{tpu_custom_call.1} parent=1 // pred_check
      %p226 = pneg %p42
    $region27: #{tpu_custom_call.1} parent=1 // pred_check_branch
      %228 = sbr.rel (%p226) target = $region29
    $region28: #{tpu_custom_call.1} parent=1 // pred_region
      %v229 = vld [vmem:[#allocation2] sm:$0xff]
      %v230 = vld [vmem:[%s2] sm:$0x1]
      %v232 = vlaneseq
      %v233 = vshrl.u32 %v232, 7
      %v234 = vsub.s32 0, %v233
      %v235 = vrot.slane %v230, %v234
      %v237 = vadd.f32 %v229, %v235
      %v238 = vtanh.pop %v237
      %v239 = vpack.c.bf16 %v238, %v238
      %240 = vst [vmem:[#allocation8] sm:$0xf] %v239
    $region29: #{tpu_custom_call.1} parent=1 // pred_fallthru
      _
    // Predicated region
    $region30: #{tpu_custom_call.1} parent=1 // pred_check
      _
    $region31: #{tpu_custom_call.1} parent=1 // pred_check_branch
      %242 = sbr.rel (0) target = $region33
    $region32: #{tpu_custom_call.1} parent=1 // pred_region
      %s244 = ssub.s32 64, 64
      %245 = vsyncadd [#allocation5], %s244
      %s247 = sshll.u32 [#allocation8], 4
      %s248 = int_to_ptr.vmem [resolvable:$true] %s247
      %250 = dma.vmem_to_hbm [thread:$0]  %s248, 64, %s3, [#allocation5]
    $region33: #{tpu_custom_call.1} parent=1 // pred_fallthru
      _
    // Predicated region
    $region34: #{tpu_custom_call.1} parent=1 // pred_check
      _
    $region35: #{tpu_custom_call.1} parent=1 // pred_check_branch
      %252 = sbr.rel (0) target = $region37
    $region36: #{tpu_custom_call.1} parent=1 // pred_region
      %253 = dma.done [#allocation5], 64
    $region37: #{tpu_custom_call.1} parent=1 // pred_fallthru
      _
    %254 = vsyncpa [#allocation4], 1
    %255 = vsyncpa [#allocation7], 1
    %256 = vsyncpa [#allocation5], 1

</llo_original>
